<compile_context>
chip_gen: v5e
topology: v5e:2x2
jax: 0.10.0
libtpu: 0.0.40
codegen_flags: <defaults>
</compile_context>

<pallas_src>
import functools
import math

import jax
import jax.numpy as jnp
from jax import lax
from jax.experimental import pallas as pl
from jax.experimental.pallas import tpu as pltpu


def _interest_box_kernel(x_ref, w1_ref, w2_ref, o_ref, *, mxu_dtype):
    bt, S, D = x_ref.shape              # block of bt batch elements
    K = w2_ref.shape[0]                 # interest_num

    x = x_ref[...]                                  # (bt, S, D) f32
    xm = x.reshape(bt * S, D).astype(mxu_dtype)     # fuse batch+seq into one MXU M dim
    # NOTE: the reshape is layout-free only when S % 8 == 0 (f32 sublane tiling).

    # layer1: x @ W1^T  (contract the in-features axis of the (out,in) weight)
    h = lax.dot_general(xm, w1_ref[...].astype(mxu_dtype),
                        dimension_numbers=(((1,), (1,)), ((), ())),
                        preferred_element_type=jnp.float32)          # (bt*S, D) f32
    h = jnp.maximum(h, 0.0)                                          # ReLU

    # layer2: h @ W2^T
    t = lax.dot_general(h.astype(mxu_dtype), w2_ref[...].astype(mxu_dtype),
                        dimension_numbers=(((1,), (1,)), ((), ())),
                        preferred_element_type=jnp.float32)          # (bt*S, K)
    t = t.reshape(bt, S, K)

    # softmax over the sequence axis (dim=1), numerically stable, EXACT normalization
    m = jnp.max(t, axis=1, keepdims=True)
    p = jnp.exp(t - m)
    denom = jnp.sum(p, axis=1, keepdims=True)
    w = p / denom                                                    # (bt, S, K)
    # TODO(synk): for very long sequences (S >> D), layer2 + softmax run with only K=4
    # of 128 lanes active; a K-on-sublane / S-on-lane layout would recover that tail.

    # out[b] = weights[b]^T @ x[b]: batched contraction over S (no transpose)
    out = lax.dot_general(w.astype(mxu_dtype), x.astype(mxu_dtype),
                          dimension_numbers=(((1,), (1,)), ((0,), (0,))),
                          preferred_element_type=jnp.float32)        # (bt, K, D)
    o_ref[...] = out.reshape(o_ref.shape).astype(o_ref.dtype)


def _vmem_capacity_bytes():
    try:
        return int(pltpu.get_tpu_info().vmem_capacity_bytes)
    except Exception:
        return 64 << 20   # conservative default = v7x per-TensorCore VMEM


def _live_block_bytes(bt, S, D, K):
    """Bytes actually live per grid step (f32 input/intermediates)."""
    x_blk = bt * S * D * 4          # embeddings block
    out_blk = bt * K * D * 4        # output block
    h = bt * S * D * 4              # f32 layer-1 intermediate
    tp = 2 * bt * S * K * 4         # logits + exp
    return 2 * x_blk + 2 * out_blk + h + tp   # 2x: double-buffered in/out pipelines


def _pick_block_b(B, S, D, K, budget_bytes, target_m=512):
    """Pick a divisor of B: feed the MXU (>=512 M rows) while keeping >=2 grid steps."""
    divisors = [d for d in range(1, B + 1) if B % d == 0]
    fitting = [d for d in divisors if _live_block_bytes(d, S, D, K) <= budget_bytes]
    if not fitting:
        return 1
    # keep >= 2 grid steps when possible: megacore sharding on v7x + DMA/compute overlap
    multi = [d for d in fitting if B // d >= 2]
    cands = multi if multi else fitting
    fed = [d for d in cands if d * S >= target_m]
    if fed:
        return min(fed)      # smallest block that saturates the MXU -> most grid steps
    return max(cands)        # otherwise the biggest block we can afford


def interest_box_aggregator(x, w1, w2, *, block_b=None, mxu_dtype=jnp.float32):
    """x: (B, S, D) f32; w1: (D, D) f32 (out,in); w2: (K, D) f32 (out,in) -> (B, K, D)."""
    B, S, D = x.shape
    K = w2.shape[0]
    # TODO(synk): pad S to a multiple of 8 upstream if it is not; the in-kernel reshapes
    # are layout-free only when S % 8 == 0.

    cap = _vmem_capacity_bytes()
    budget = int(cap * 0.6)                      # generation-aware working-set ceiling
    if block_b is None:
        block_b = _pick_block_b(B, S, D, K, budget)
    assert B % block_b == 0, "block_b must divide batch size"
    grid = (B // block_b,)

    weight_bytes = (w1.size + w2.size) * 4
    live = _live_block_bytes(block_b, S, D, K) + weight_bytes
    vmem_limit = int(min(0.75 * cap, max(2 * live, 32 << 20)))

    # Lane/sublane-dense flattened output when the block allows unmasked stores.
    flat_out = (block_b * K) % 8 == 0 or block_b == B
    if flat_out:
        out_shape = jax.ShapeDtypeStruct((B * K, D), jnp.float32)
        out_spec = pl.BlockSpec((block_b * K, D), lambda b: (b, 0))
    else:
        out_shape = jax.ShapeDtypeStruct((B, K, D), jnp.float32)
        out_spec = pl.BlockSpec((block_b, K, D), lambda b: (b, 0, 0))

    out = pl.pallas_call(
        functools.partial(_interest_box_kernel, mxu_dtype=mxu_dtype),
        out_shape=out_shape,
        grid_spec=pltpu.PrefetchScalarGridSpec(
            num_scalar_prefetch=0,
            grid=grid,
            in_specs=[
                pl.BlockSpec((block_b, S, D), lambda b: (b, 0, 0)),  # embeddings block
                pl.BlockSpec((D, D), lambda b: (0, 0)),              # W1 (resident)
                pl.BlockSpec((K, D), lambda b: (0, 0)),              # W2 (resident)
            ],
            out_specs=out_spec,
        ),
        compiler_params=pltpu.CompilerParams(
            dimension_semantics=("parallel",),     # shard batch grid over TCs (v7x)
            vmem_limit_bytes=vmem_limit,
        ),
    )(x, w1, w2)

    if flat_out:
        out = out.reshape(B, K, D)
    return out


def _xavier_uniform(key, fan_out, fan_in):
    # matches nn.init.xavier_uniform_ for a (fan_out, fan_in) Linear weight
    bound = math.sqrt(6.0 / (fan_in + fan_out))
    return jax.random.uniform(key, (fan_out, fan_in), jnp.float32,
                              minval=-bound, maxval=bound)


def _reference(x, w1, w2, mxu_dtype=jnp.float32):
    xm = x.astype(mxu_dtype)
    h = jnp.maximum(
        jnp.einsum('bsd,ed->bse', xm, w1.astype(mxu_dtype),
                   preferred_element_type=jnp.float32), 0.0)
    t = jnp.einsum('bse,ke->bsk', h.astype(mxu_dtype), w2.astype(mxu_dtype),
                   preferred_element_type=jnp.float32)
    w = jax.nn.softmax(t, axis=1)
    return jnp.einsum('bsk,bsd->bkd', w.astype(mxu_dtype), xm,
                      preferred_element_type=jnp.float32)


if __name__ == "__main__":
    # dim=128 (lane-dense last axis), interest_num=4, batch=2, seq=16
    B, S, D, K = 2, 16, 128, 4
    key = jax.random.PRNGKey(0)
    kx, k1, k2 = jax.random.split(key, 3)

    x = jax.random.normal(kx, (B, S, D), jnp.float32)
    w1 = _xavier_uniform(k1, D, D)   # layer1.weight
    w2 = _xavier_uniform(k2, K, D)   # layer2.weight

    # ---- exact path (f32 MXU operands): semantics of the f32 PyTorch module ----
    out = jax.block_until_ready(interest_box_aggregator(x, w1, w2))
    ref = _reference(x, w1, w2)
    assert out.shape == (B, K, D)
    err = float(jnp.max(jnp.abs(out - ref)))
    # XLA's default-precision f32 matmuls on TPU use reduced-precision MXU passes,
    # so kernel-vs-reference differences of a few 1e-3 are expected even with an
    # exact softmax; 1e-2 still catches any real semantic bug (values are O(1)).
    assert err < 1e-2, f"f32 mismatch vs. reference: {err}"

    # ---- bf16-MXU fast path (f32 accumulation): compared against a reference that
    # applies the same bf16 casts, so only accumulation-order noise remains ----
    out_bf = jax.block_until_ready(
        interest_box_aggregator(x, w1, w2, mxu_dtype=jnp.bfloat16))
    ref_bf = _reference(x, w1, w2, mxu_dtype=jnp.bfloat16)
    err_bf = float(jnp.max(jnp.abs(out_bf - ref_bf)))
    assert err_bf < 2e-2, f"bf16 mismatch vs. bf16 reference: {err_bf}"

    print("KERNEL_OK")
</pallas_src>

<mosaic_0001>
module attributes {stable_mosaic.version = 11 : i64} {
  func.func @_interest_box_kernel(%arg0: i32, %arg1: memref<1x16x128xf32, #tpu.memory_space<vmem>>, %arg2: memref<128x128xf32, #tpu.memory_space<vmem>>, %arg3: memref<4x128xf32, #tpu.memory_space<vmem>>, %arg4: memref<1x4x128xf32, #tpu.memory_space<vmem>>) attributes {dimension_semantics = [#tpu.dimension_semantics<parallel>], iteration_bounds = array<i64: 2>, scalar_prefetch = 0 : i64, scratch_operands = 0 : i64, tpu.core_type = #tpu.core_type<tc>, window_params = [{transform_indices = @transform_0, window_bounds = array<i64: 1, 16, 128>}, {pipeline_mode = #tpu.pipeline_mode<synchronous>, transform_indices = @transform_1, window_bounds = array<i64: 128, 128>}, {pipeline_mode = #tpu.pipeline_mode<synchronous>, transform_indices = @transform_2, window_bounds = array<i64: 4, 128>}, {transform_indices = @transform_3, window_bounds = array<i64: 1, 4, 128>}]} {
    %c0 = arith.constant 0 : index
    %c0_0 = arith.constant 0 : index
    %c0_1 = arith.constant 0 : index
    %0 = vector.load %arg1[%c0, %c0_0, %c0_1] : memref<1x16x128xf32, #tpu.memory_space<vmem>>, vector<1x16x128xf32>
    %1 = vector.shape_cast %0 : vector<1x16x128xf32> to vector<16x128xf32>
    %c0_2 = arith.constant 0 : index
    %c0_3 = arith.constant 0 : index
    %2 = vector.load %arg2[%c0_2, %c0_3] : memref<128x128xf32, #tpu.memory_space<vmem>>, vector<128x128xf32>
    %cst = arith.constant dense<0.000000e+00> : vector<16x128xf32>
    %3 = tpu.matmul %1, %2, %cst {dimension_numbers = #tpu.dot_dimension_numbers<[1], [1], [0], [0], [0, 0, 1, 0], [], []>} : vector<16x128xf32>, vector<128x128xf32>, vector<16x128xf32> -> vector<16x128xf32>
    %cst_4 = arith.constant 0.000000e+00 : f32
    %4 = vector.broadcast %cst_4 : f32 to vector<16x128xf32>
    %5 = arith.maximumf %3, %4 : vector<16x128xf32>
    %c0_5 = arith.constant 0 : index
    %c0_6 = arith.constant 0 : index
    %6 = vector.load %arg3[%c0_5, %c0_6] : memref<4x128xf32, #tpu.memory_space<vmem>>, vector<4x128xf32>
    %cst_7 = arith.constant dense<0.000000e+00> : vector<16x4xf32>
    %7 = tpu.matmul %5, %6, %cst_7 {dimension_numbers = #tpu.dot_dimension_numbers<[1], [1], [0], [0], [0, 0, 1, 0], [], []>} : vector<16x128xf32>, vector<4x128xf32>, vector<16x4xf32> -> vector<16x4xf32>
    %8 = vector.shape_cast %7 : vector<16x4xf32> to vector<1x16x4xf32>
    %cst_8 = arith.constant dense<0xFF800000> : vector<1x4xf32>
    %9 = vector.multi_reduction <maximumf>, %8, %cst_8 [1] : vector<1x16x4xf32> to vector<1x4xf32>
    %10 = vector.shape_cast %9 : vector<1x4xf32> to vector<1x1x4xf32>
    %11 = vector.broadcast %10 : vector<1x1x4xf32> to vector<1x16x4xf32>
    %12 = arith.subf %8, %11 : vector<1x16x4xf32>
    %13 = math.exp %12 : vector<1x16x4xf32>
    %cst_9 = arith.constant dense<0.000000e+00> : vector<1x4xf32>
    %14 = vector.multi_reduction <add>, %13, %cst_9 [1] : vector<1x16x4xf32> to vector<1x4xf32>
    %15 = vector.shape_cast %14 : vector<1x4xf32> to vector<1x1x4xf32>
    %16 = vector.broadcast %15 : vector<1x1x4xf32> to vector<1x16x4xf32>
    %17 = arith.divf %13, %16 : vector<1x16x4xf32>
    %cst_10 = arith.constant dense<0.000000e+00> : vector<1x4x128xf32>
    %18 = tpu.matmul %17, %0, %cst_10 {dimension_numbers = #tpu.dot_dimension_numbers<[1], [1], [2], [2], [0, 0, 0, 2, 1, 2], [0], [0]>} : vector<1x16x4xf32>, vector<1x16x128xf32>, vector<1x4x128xf32> -> vector<1x4x128xf32>
    %c0_11 = arith.constant 0 : index
    %c0_12 = arith.constant 0 : index
    %c0_13 = arith.constant 0 : index
    %19 = vector.load %arg4[%c0_11, %c0_12, %c0_13] : memref<1x4x128xf32, #tpu.memory_space<vmem>>, vector<1x4x128xf32>
    tpu.vector_store %arg4[%c0_11, %c0_12, %c0_13], %18 {strides = array<i32>} : memref<1x4x128xf32, #tpu.memory_space<vmem>>, vector<1x4x128xf32>,
    return
  }
  func.func @transform_0(%arg0: i32) -> (i32, i32, i32) {
    %c0_i32 = arith.constant 0 : i32
    %c0_i32_0 = arith.constant 0 : i32
    %c0_i32_1 = arith.constant 0 : i32
    return %arg0, %c0_i32, %c0_i32_0 : i32, i32, i32
  }
  func.func @transform_1(%arg0: i32) -> (i32, i32) {
    %c0_i32 = arith.constant 0 : i32
    %c0_i32_0 = arith.constant 0 : i32
    %c0_i32_1 = arith.constant 0 : i32
    return %c0_i32, %c0_i32_0 : i32, i32
  }
  func.func @transform_2(%arg0: i32) -> (i32, i32) {
    %c0_i32 = arith.constant 0 : i32
    %c0_i32_0 = arith.constant 0 : i32
    %c0_i32_1 = arith.constant 0 : i32
    return %c0_i32, %c0_i32_0 : i32, i32
  }
  func.func @transform_3(%arg0: i32) -> (i32, i32, i32) {
    %c0_i32 = arith.constant 0 : i32
    %c0_i32_0 = arith.constant 0 : i32
    %c0_i32_1 = arith.constant 0 : i32
    return %arg0, %c0_i32, %c0_i32_0 : i32, i32, i32
  }
}

</mosaic_0001>

<llo_original>
// kernel: tpu_custom_call.1
$region0: #{tpu_custom_call.1}
  #allocation0 [shape = 'u32[]', space=smem, size = 0x4, offset = 0x4, fixed_abs, tag = 'smem constant byte address 0x4 - core index']
  #allocation1 [shape = 'u32[72,128]{1,0:T(1,128)}', space=vmem, size = 0x9000, scoped, tag = 'internal scratch']
  %s0 = inlined_call_operand.hbm [shape: f32[2,16,128], index: 0, kind: input, shape index: {}]
  %s1 = inlined_call_operand.hbm [shape: f32[128,128], index: 1, kind: input, shape index: {}]
  %s2 = inlined_call_operand.hbm [shape: f32[4,128], index: 2, kind: input, shape index: {}]
  %s3 = inlined_call_operand.hbm [shape: f32[2,4,128], index: 3, kind: output, shape index: {}]
  %s4 = sld [smem:[#allocation0]]
  $region57: #{tpu_custom_call.1} parent=0
    _
  %s6 = ssub.s32 1, %s4
  %s7 = scalar_select 0, %s6, %s4
  $region1: #{tpu_custom_call.1} parent=0
    #allocation2 [shape = 'u8[16384]{0}', space=vmem, size = 0x4000, scoped, tag = 'input window, operand 0']
    #allocation3 [shape = 's32[2]{0}', space=sflag, size = 0x8, scoped, tag = 'scoped memory for tpu_custom_call.1']
    #allocation4 [shape = 's32[2]{0}', space=sflag, size = 0x8, scoped, tag = 'scoped memory for tpu_custom_call.1']
    #allocation5 [shape = 'u8[65536]{0}', space=vmem, size = 0x10000, scoped, tag = 'input window, operand 1, single buffered']
    #allocation6 [shape = 's32[1]{0}', space=sflag, size = 0x4, scoped, tag = 'scoped memory for tpu_custom_call.1']
    #allocation7 [shape = 'u8[2048]{0}', space=vmem, size = 0x800, scoped, tag = 'input window, operand 2, single buffered']
    #allocation8 [shape = 'u8[4096]{0}', space=vmem, size = 0x1000, scoped, tag = 'output window, operand 0']
    %8 = vsyncpa [#allocation3], 0
    %s9 = scalar_lea.sflag [#allocation3], 1
    %10 = vsyncpa %s9, 0
    %11 = vsyncpa [#allocation6], 0
    %12 = vsyncpa [#allocation4], 0
    %s13 = scalar_lea.sflag [#allocation4], 1
    %14 = vsyncpa %s13, 0
    loop: start=0, step=1, limit=4
    $region2: #{tpu_custom_call.1} parent=1 // loop_pre_header
      _
    $region3: #{tpu_custom_call.1} parent=1 // loop_header
      %s16 = sphi 0, %s20
      %p17 = scmp.ge.s32.totalorder %s16, 4
      %s26 = sphi 0, %s28
      %s29 = sphi 0, %s26
      %s30 = sphi 0, %s29
      %s46 = sphi 0, %s30
      %s50 = sphi 0, %s50
      %s52 = sphi 0, %s50
      %s53 = sphi 0, %s52
      %s67 = sphi 0, %s53
      %s71 = sphi 0, %s71
      %s73 = sphi 0, %s71
      %s74 = sphi 0, %s73
      %s88 = sphi 0, %s74
      %s94 = sphi 0, %s96
      %s97 = sphi 0, %s94
      %s98 = sphi 0, %s97
      %s114 = sphi 0, %s98
    $region4: #{tpu_custom_call.1} parent=1 // loop_header_branch
      %19 = sbr.rel (%p17) target = $region8
    $region5: #{tpu_custom_call.1} parent=1 // loop_body
      %s21 = ssub.s32 %s16, 1
      %s22 = ssub.s32 %s16, 2
      %s23 = sadd.s32 %s16, 1
      %s24 = ssub.s32 %s16, %s23
      %p25 = scmp.eq.s32.totalorder %s24, 0
      %s27 = sadd.s32 %s26, 1
      %s28 = scalar_select %p25, %s26, %s27
      %p31 = pneg %p25
      %p32 = scmp.eq.s32.totalorder %s16, 1
      %p33 = por %p31, %p32
      %p34 = scmp.ne.s32.totalorder %s26, %s29
      %p35 = scmp.eq.s32.totalorder %s16, 0
      %p36 = por %p34, %p35
      %p37 = scmp.ne.s32.totalorder %s26, %s29
      %p38 = scmp.eq.s32.totalorder %s21, 1
      %p39 = por %p37, %p38
      %p40 = scmp.ne.s32.totalorder %s29, %s30
      %p41 = scmp.eq.s32.totalorder %s21, 0
      %p42 = por %p40, %p41
      %p43 = scmp.ne.s32.totalorder %s29, %s30
      %p44 = scmp.eq.s32.totalorder %s22, 1
      %p45 = por %p43, %p44
      %p47 = scmp.ne.s32.totalorder %s30, %s46
      %p48 = scmp.eq.s32.totalorder %s22, 0
      %p49 = por %p47, %p48
      %s51 = sadd.s32 %s50, 1
      %p54 = scmp.eq.s32.totalorder %s16, 1
      %p55 = scmp.ne.s32.totalorder %s50, %s52
      %p56 = scmp.eq.s32.totalorder %s16, 0
      %p57 = por %p55, %p56
      %p58 = scmp.ne.s32.totalorder %s50, %s52
      %p59 = scmp.eq.s32.totalorder %s21, 1
      %p60 = por %p58, %p59
      %p61 = scmp.ne.s32.totalorder %s52, %s53
      %p62 = scmp.eq.s32.totalorder %s21, 0
      %p63 = por %p61, %p62
      %p64 = scmp.ne.s32.totalorder %s52, %s53
      %p65 = scmp.eq.s32.totalorder %s22, 1
      %p66 = por %p64, %p65
      %p68 = scmp.ne.s32.totalorder %s53, %s67
      %p69 = scmp.eq.s32.totalorder %s22, 0
      %p70 = por %p68, %p69
      %s72 = sadd.s32 %s71, 1
      %p75 = scmp.eq.s32.totalorder %s16, 1
      %p76 = scmp.ne.s32.totalorder %s71, %s73
      %p77 = scmp.eq.s32.totalorder %s16, 0
      %p78 = por %p76, %p77
      %p79 = scmp.ne.s32.totalorder %s71, %s73
      %p80 = scmp.eq.s32.totalorder %s21, 1
      %p81 = por %p79, %p80
      %p82 = scmp.ne.s32.totalorder %s73, %s74
      %p83 = scmp.eq.s32.totalorder %s21, 0
      %p84 = por %p82, %p83
      %p85 = scmp.ne.s32.totalorder %s73, %s74
      %p86 = scmp.eq.s32.totalorder %s22, 1
      %p87 = por %p85, %p86
      %p89 = scmp.ne.s32.totalorder %s74, %s88
      %p90 = scmp.eq.s32.totalorder %s22, 0
      %p91 = por %p89, %p90
      %s92 = ssub.s32 %s16, %s23
      %p93 = scmp.eq.s32.totalorder %s92, 0
      %s95 = sadd.s32 %s94, 1
      %s96 = scalar_select %p93, %s94, %s95
      %p99 = pneg %p93
      %p100 = scmp.eq.s32.totalorder %s16, 1
      %p101 = por %p99, %p100
      %p102 = scmp.ne.s32.totalorder %s94, %s97
      %p103 = scmp.eq.s32.totalorder %s16, 0
      %p104 = por %p102, %p103
      %p105 = scmp.ne.s32.totalorder %s94, %s97
      %p106 = scmp.eq.s32.totalorder %s21, 1
      %p107 = por %p105, %p106
      %p108 = scmp.ne.s32.totalorder %s97, %s98
      %p109 = scmp.eq.s32.totalorder %s21, 0
      %p110 = por %p108, %p109
      %p111 = scmp.ne.s32.totalorder %s97, %s98
      %p112 = scmp.eq.s32.totalorder %s22, 1
      %p113 = por %p111, %p112
      %p115 = scmp.ne.s32.totalorder %s98, %s114
      %p116 = scmp.eq.s32.totalorder %s22, 0
      %p117 = por %p115, %p116
      %p118 = scmp.le.s32.totalorder 1, %s16
      %p119 = scmp.lt.s32.totalorder %s16, 3
      %p120 = pnand %p118, %p119
      %p121 = pneg %p120
      // Predicated region
      $region9: #{tpu_custom_call.1} parent=5 // pred_check
        _
      $region10: #{tpu_custom_call.1} parent=5 // pred_check_branch
        %123 = sbr.rel (%p120) target = $region12
      $region11: #{tpu_custom_call.1} parent=5 // pred_region
        %s124 = ssub.s32 %s16, 1
        // Predicated region
        $region13: #{tpu_custom_call.1} parent=11 // pred_check
          %p125 = pneg %p63
        $region14: #{tpu_custom_call.1} parent=11 // pred_check_branch
          %127 = sbr.rel (%p125) target = $region16
        $region15: #{tpu_custom_call.1} parent=11 // pred_region
          %129 = vsyncadd [#allocation6], 0
          %s130 = sshll.u32 %s1, 4
          %s131 = int_to_ptr.hbm [resolvable:$true] %s130
          %s132 = sshll.u32 [#allocation5], 4
          %s133 = int_to_ptr.vmem [resolvable:$true] %s132
          %138 = dma.hbm_to_vmem [thread:$0]  %s131, 2048, %s133, [#allocation6], 128, 128, 8
        $region16: #{tpu_custom_call.1} parent=11 // pred_fallthru
          _
        // Predicated region
        $region17: #{tpu_custom_call.1} parent=11 // pred_check
          %p139 = pneg %p84
        $region18: #{tpu_custom_call.1} parent=11 // pred_check_branch
          %141 = sbr.rel (%p139) target = $region20
        $region19: #{tpu_custom_call.1} parent=11 // pred_region
          %143 = vsyncadd [#allocation6], 0
          %s145 = sshll.u32 %s2, 4
          %s146 = int_to_ptr.hbm [resolvable:$true] %s145
          %s147 = sshll.u32 [#allocation7], 4
          %s148 = int_to_ptr.vmem [resolvable:$true] %s147
          %150 = dma.hbm_to_vmem [thread:$0]  %s146, 64, %s148, [#allocation6]
        $region20: #{tpu_custom_call.1} parent=11 // pred_fallthru
          _
      $region12: #{tpu_custom_call.1} parent=5 // pred_fallthru
        _
      %p151 = scmp.lt.s32.totalorder %s16, 2
      // Predicated region
      $region21: #{tpu_custom_call.1} parent=5 // pred_check
        %p152 = pneg %p151
      $region22: #{tpu_custom_call.1} parent=5 // pred_check_branch
        %154 = sbr.rel (%p152) target = $region24
      $region23: #{tpu_custom_call.1} parent=5 // pred_region
        // Predicated region
        $region25: #{tpu_custom_call.1} parent=23 // pred_check
          %p155 = pneg %p36
        $region26: #{tpu_custom_call.1} parent=23 // pred_check_branch
          %157 = sbr.rel (%p155) target = $region28
        $region27: #{tpu_custom_call.1} parent=23 // pred_region
          %s158 = sand.u32 %s26, 1
          %s159 = scalar_lea.sflag [#allocation3], %s158
          %s160 = sand.u32 %s26, 1
          %s161 = smul.addr %s160, 16
          %s162 = scalar_lea.vmem [#allocation2], %s161
          %164 = vsyncadd %s159, 0
          %s165 = smul.addr %s16, 2
          %s166 = smul.addr %s165, 8
          %s167 = scalar_lea.hbm %s0, %s166
          %s168 = sshll.u32 %s167, 4
          %s169 = int_to_ptr.hbm [resolvable:$true] %s168
          %s170 = sshll.u32 %s162, 4
          %s171 = int_to_ptr.vmem [resolvable:$true] %s170
          %176 = dma.hbm_to_vmem [thread:$0]  %s169, 256, %s171, %s159, 128, 128, 8
        $region28: #{tpu_custom_call.1} parent=23 // pred_fallthru
          _
      $region24: #{tpu_custom_call.1} parent=5 // pred_fallthru
        _
      %p177 = scmp.le.s32.totalorder 1, %s16
      %p178 = scmp.lt.s32.totalorder %s16, 3
      %p179 = pnand %p177, %p178
      %p180 = pneg %p179
      // Predicated region
      $region29: #{tpu_custom_call.1} parent=5 // pred_check
        _
      $region30: #{tpu_custom_call.1} parent=5 // pred_check_branch
        %182 = sbr.rel (%p179) target = $region32
      $region31: #{tpu_custom_call.1} parent=5 // pred_region
        %s183 = ssub.s32 %s16, 1
        %s184 = sand.u32 %s29, 1
        %s185 = scalar_lea.sflag [#allocation3], %s184
        %s186 = sand.u32 %s29, 1
        %s187 = smul.addr %s186, 16
        %s188 = scalar_lea.vmem [#allocation2], %s187
        // Predicated region
        $region33: #{tpu_custom_call.1} parent=31 // pred_check
          %p189 = pneg %p42
        $region34: #{tpu_custom_call.1} parent=31 // pred_check_branch
          %191 = sbr.rel (%p189) target = $region36
        $region35: #{tpu_custom_call.1} parent=31 // pred_region
          %193 = dma.done %s185, 256
        $region36: #{tpu_custom_call.1} parent=31 // pred_fallthru
          _
        // Predicated region
        $region37: #{tpu_custom_call.1} parent=31 // pred_check
          %p194 = pneg %p63
        $region38: #{tpu_custom_call.1} parent=31 // pred_check_branch
          %196 = sbr.rel (%p194) target = $region40
        $region39: #{tpu_custom_call.1} parent=31 // pred_region
          %198 = dma.done [#allocation6], 2048
        $region40: #{tpu_custom_call.1} parent=31 // pred_fallthru
          _
        // Predicated region
        $region41: #{tpu_custom_call.1} parent=31 // pred_check
          %p199 = pneg %p84
        $region42: #{tpu_custom_call.1} parent=31 // pred_check_branch
          %201 = sbr.rel (%p199) target = $region44
        $region43: #{tpu_custom_call.1} parent=31 // pred_region
          %203 = dma.done [#allocation6], 64
        $region44: #{tpu_custom_call.1} parent=31 // pred_fallthru
          _
        %s204 = sand.u32 %s29, 1
        %s205 = scalar_lea.sflag [#allocation3], %s204
        %s206 = sand.u32 %s29, 1
        %s207 = smul.addr %s206, 16
        %s208 = scalar_lea.vmem [#allocation2], %s207
        %p209 = pneg %p42
        %p210 = pneg %p39
        %p211 = pneg %p63
        %p212 = pneg %p60
        %p213 = pneg %p84
        %p214 = pneg %p81
        %p215 = pneg %p110
        %p216 = pneg %p107
        %s217 = sand.u32 %s97, 1
        %s218 = scalar_lea.sflag [#allocation4], %s217
        %s219 = sand.u32 %s97, 1
        %s220 = smul.addr %s219, 4
        %s221 = scalar_lea.vmem [#allocation8], %s220
        %v222 = vld [vmem:[%s188] sm:$0xff]
        %v223 = vld [vmem:[%s188 + $0x8] sm:$0xff]
        %v224 = vld [vmem:[#allocation5] sm:$0xff]
        %v225 = vld [vmem:[#allocation5 + $0x8] sm:$0xff]
        %v226 = vld [vmem:[#allocation5 + $0x10] sm:$0xff]
        %v227 = vld [vmem:[#allocation5 + $0x18] sm:$0xff]
        %v228 = vld [vmem:[#allocation5 + $0x20] sm:$0xff]
        %v229 = vld [vmem:[#allocation5 + $0x28] sm:$0xff]
        %v230 = vld [vmem:[#allocation5 + $0x30] sm:$0xff]
        %v231 = vld [vmem:[#allocation5 + $0x38] sm:$0xff]
        %v232 = vld [vmem:[#allocation5 + $0x40] sm:$0xff]
        %v233 = vld [vmem:[#allocation5 + $0x48] sm:$0xff]
        %v234 = vld [vmem:[#allocation5 + $0x50] sm:$0xff]
        %v235 = vld [vmem:[#allocation5 + $0x58] sm:$0xff]
        %v236 = vld [vmem:[#allocation5 + $0x60] sm:$0xff]
        %v237 = vld [vmem:[#allocation5 + $0x68] sm:$0xff]
        %v238 = vld [vmem:[#allocation5 + $0x70] sm:$0xff]
        %v239 = vld [vmem:[#allocation5 + $0x78] sm:$0xff]
        %240 = vmatpush.xpose.msra.mxu0 %v239
        %241 = vmatpush.xpose.msra.mxu0 %v238
        %242 = vmatpush.xpose.msra.mxu0 %v237
        %243 = vmatpush.xpose.msra.mxu0 %v236
        %244 = vmatpush.xpose.msra.mxu0 %v235
        %245 = vmatpush.xpose.msra.mxu0 %v234
        %246 = vmatpush.xpose.msra.mxu0 %v233
        %247 = vmatpush.xpose.msra.mxu0 %v232
        %248 = vmatpush.xpose.msra.mxu0 %v231
        %249 = vmatpush.xpose.msra.mxu0 %v230
        %250 = vmatpush.xpose.msra.mxu0 %v229
        %251 = vmatpush.xpose.msra.mxu0 %v228
        %252 = vmatpush.xpose.msra.mxu0 %v227
        %253 = vmatpush.xpose.msra.mxu0 %v226
        %254 = vmatpush.xpose.msra.mxu0 %v225
        %255 = vmatpush.xpose.msra.mxu0 %v224
        %256 = vmatmul.f32.gmra.mxu0 %v222
        %v257 = vpop.f32.mrf.mxu0
        %v258 = vadd.f32 0.0, %v257
        %259 = vmatmul.f32.gmra.mxu0 %v223
        %v260 = vpop.f32.mrf.mxu0
        %v261 = vadd.f32 0.0, %v260
        %262 = vdwg.mxu0
        %v263 = vmax.f32 %v258, 0.0
        %v264 = vmax.f32 %v261, 0.0
        %v265 = vld [vmem:[#allocation7] sm:$0xf]
        %266 = vmatpush.xpose.msra.mxu0 0.0
        %267 = vmatpush.xpose.msra.mxu0 0.0
        %268 = vmatpush.xpose.msra.mxu0 0.0
        %269 = vmatpush.xpose.msra.mxu0 0.0
        %270 = vmatpush.xpose.msra.mxu0 0.0
        %271 = vmatpush.xpose.msra.mxu0 0.0
        %272 = vmatpush.xpose.msra.mxu0 0.0
        %273 = vmatpush.xpose.msra.mxu0 0.0
        %274 = vmatpush.xpose.msra.mxu0 0.0
        %275 = vmatpush.xpose.msra.mxu0 0.0
        %276 = vmatpush.xpose.msra.mxu0 0.0
        %277 = vmatpush.xpose.msra.mxu0 0.0
        %278 = vmatpush.xpose.msra.mxu0 0.0
        %279 = vmatpush.xpose.msra.mxu0 0.0
        %280 = vmatpush.xpose.msra.mxu0 0.0
        %281 = vmatpush.xpose.msra.mxu0 %v265
        %282 = vmatmul.f32.gmra.mxu0 %v263
        %v283 = vpop.f32.mrf.mxu0
        %v284 = vadd.f32 0.0, %v283
        %285 = vmatmul.f32.gmra.mxu0 %v264
        %v286 = vpop.f32.mrf.mxu0
        %v287 = vadd.f32 0.0, %v286
        %288 = vdwg.mxu0
        %vm289 = vcmask 31744
        %v290 = vsel %vm289, %v284, -inf
        %v291 = vsel %vm289, %v287, -inf
        %v292 = vmax.f32 %v290, %v291
        %v293 = vrot.slane %v292, 4
        %v294 = vmax.f32 %v292, %v293
        %v295 = vrot.slane %v294, 2
        %v296 = vmax.f32 %v294, %v295
        %v297 = vrot.slane %v296, 1
        %v298 = vmax.f32 %v296, %v297
        %v299 = vsub.f32 %v284, %v298
        %v300 = vsub.f32 %v287, %v298
        %v301 = vmul.f32 %v299, 1.442695
        %v302 = vpow.pop %v301
        %v303 = vmul.f32 %v300, 1.442695
        %v304 = vpow.pop %v303
        %v305 = vsel %vm289, %v302, 0.0
        %v306 = vsel %vm289, %v304, 0.0
        %v307 = vadd.f32 %v305, %v306
        %v308 = vrot.slane %v307, 4
        %v309 = vadd.f32 %v307, %v308
        %v310 = vrot.slane %v309, 2
        %v311 = vadd.f32 %v309, %v310
        %v312 = vrot.slane %v311, 1
        %v313 = vadd.f32 %v311, %v312
        %v314 = vrcp.pop %v313
        %v315 = vmul.f32 %v313, %v314
        %v316 = vsub.f32 1.0, %v315
        %v317 = vmul.f32 %v314, %v316
        %v318 = vadd.f32 %v314, %v317
        %vm319 = vweird.f32 %v313
        %vm320 = vweird.f32 %v314
        %vm321 = vmor %vm319, %vm320
        %v322 = vsel %vm321, %v314, %v318
        %v323 = vand.u32 2147483647, %v313
        %vm324 = vcmp.eq.f32.partialorder %v323, 8.507059e+37
        %v325 = vand.u32 %v313, 2147483648
        %v326 = vor.u32 1.1754944e-38, %v325
        %v327 = vsel %vm324, %v326, %v322
        %v328 = vmul.f32 %v302, %v327
        %v329 = vmul.f32 %v304, %v327
        %330 = vxpose.xlu0.b32.start [1/16] %v328, 128
        %331 = vxpose.xlu0.b32.cont [2/16] %v329, 128
        %332 = vxpose.xlu0.b32.cont [3/16] 0.0, 128
        %333 = vxpose.xlu0.b32.cont [4/16] 0.0, 128
        %334 = vxpose.xlu0.b32.cont [5/16] 0.0, 128
        %335 = vxpose.xlu0.b32.cont [6/16] 0.0, 128
        %336 = vxpose.xlu0.b32.cont [7/16] 0.0, 128
        %337 = vxpose.xlu0.b32.cont [8/16] 0.0, 128
        %338 = vxpose.xlu0.b32.cont [9/16] 0.0, 128
        %339 = vxpose.xlu0.b32.cont [10/16] 0.0, 128
        %340 = vxpose.xlu0.b32.cont [11/16] 0.0, 128
        %341 = vxpose.xlu0.b32.cont [12/16] 0.0, 128
        %342 = vxpose.xlu0.b32.cont [13/16] 0.0, 128
        %343 = vxpose.xlu0.b32.cont [14/16] 0.0, 128
        %344 = vxpose.xlu0.b32.cont [15/16] 0.0, 128
        %345 = vxpose.xlu0.b32.end [16/16] 0.0, 128
        %v346 = vpop.trf.xlu0
        %v347 = vpop.trf.xlu0
        %v348 = vpop.trf.xlu0
        %v349 = vpop.trf.xlu0
        %v350 = vpop.trf.xlu0
        %v351 = vpop.trf.xlu0
        %v352 = vpop.trf.xlu0
        %v353 = vpop.trf.xlu0
        %v354 = vpop.trf.xlu0
        %v355 = vpop.trf.xlu0
        %v356 = vpop.trf.xlu0
        %v357 = vpop.trf.xlu0
        %v358 = vpop.trf.xlu0
        %v359 = vpop.trf.xlu0
        %v360 = vpop.trf.xlu0
        %v361 = vpop.trf.xlu0
        %vm362 = vcmask 130048
        %v364 = vsel %vm362, %v346, 0
        %366 = vmatpush.msra.mxu0 0.0
        %367 = vmatpush.msra.mxu0 0.0
        %368 = vmatpush.msra.mxu0 0.0
        %369 = vmatpush.msra.mxu0 0.0
        %370 = vmatpush.msra.mxu0 0.0
        %371 = vmatpush.msra.mxu0 0.0
        %372 = vmatpush.msra.mxu0 0.0
        %373 = vmatpush.msra.mxu0 0.0
        %374 = vmatpush.msra.mxu0 0.0
        %375 = vmatpush.msra.mxu0 0.0
        %376 = vmatpush.msra.mxu0 0.0
        %377 = vmatpush.msra.mxu0 0.0
        %378 = vmatpush.msra.mxu0 0.0
        %379 = vmatpush.msra.mxu0 0.0
        %380 = vmatpush.msra.mxu0 %v223
        %381 = vmatpush.msra.mxu0 %v222
        %382 = vmatmul.f32.gmra.mxu0 %v364
        %v383 = vpop.f32.mrf.mxu0
        %v384 = vadd.f32 0.0, %v383
        %385 = vdwg.mxu0
        %386 = vst [vmem:[%s221] sm:$0xf] %v384
        %s387 = sand.u32 %s97, 1
        %s388 = scalar_lea.sflag [#allocation4], %s387
        %s389 = sand.u32 %s97, 1
        %s390 = smul.addr %s389, 4
        %s391 = scalar_lea.vmem [#allocation8], %s390
        // Predicated region
        $region45: #{tpu_custom_call.1} parent=31 // pred_check
          %p392 = pneg %p107
        $region46: #{tpu_custom_call.1} parent=31 // pred_check_branch
          %394 = sbr.rel (%p392) target = $region48
        $region47: #{tpu_custom_call.1} parent=31 // pred_region
          %396 = vsyncadd %s388, 0
          %s397 = smul.addr %s21, 4
          %s398 = scalar_lea.hbm %s3, %s397
          %s400 = sshll.u32 %s391, 4
          %s401 = int_to_ptr.vmem [resolvable:$true] %s400
          %s402 = sshll.u32 %s398, 4
          %s403 = int_to_ptr.hbm [resolvable:$true] %s402
          %405 = dma.vmem_to_hbm [thread:$0]  %s401, 64, %s403, %s388
        $region48: #{tpu_custom_call.1} parent=31 // pred_fallthru
          _
      $region32: #{tpu_custom_call.1} parent=5 // pred_fallthru
        _
      %p406 = scmp.le.s32.totalorder 2, %s16
      // Predicated region
      $region49: #{tpu_custom_call.1} parent=5 // pred_check
        %p407 = pneg %p406
      $region50: #{tpu_custom_call.1} parent=5 // pred_check_branch
        %409 = sbr.rel (%p407) target = $region52
      $region51: #{tpu_custom_call.1} parent=5 // pred_region
        %s410 = ssub.s32 %s16, 2
        // Predicated region
        $region53: #{tpu_custom_call.1} parent=51 // pred_check
          %p411 = pneg %p113
        $region54: #{tpu_custom_call.1} parent=51 // pred_check_branch
          %413 = sbr.rel (%p411) target = $region56
        $region55: #{tpu_custom_call.1} parent=51 // pred_region
          %s414 = sand.u32 %s98, 1
          %s415 = scalar_lea.sflag [#allocation4], %s414
          %s416 = sand.u32 %s98, 1
          %s417 = smul.addr %s416, 4
          %s418 = scalar_lea.vmem [#allocation8], %s417
          %420 = dma.done %s415, 64
        $region56: #{tpu_custom_call.1} parent=51 // pred_fallthru
          _
      $region52: #{tpu_custom_call.1} parent=5 // pred_fallthru
        _
    $region6: #{tpu_custom_call.1} parent=1 // loop_footer
      %s20 = sadd.s32 1, %s16
    $region7: #{tpu_custom_call.1} parent=1 // loop_footer_branch
      %15 = sbr.rel target = $region3
    $region8: #{tpu_custom_call.1} parent=1 // loop_exit
      _
    %421 = vsyncpa [#allocation3], 1
    %s422 = scalar_lea.sflag [#allocation3], 1
    %423 = vsyncpa %s422, 1
    %424 = vsyncpa [#allocation6], 1
    %425 = vsyncpa [#allocation4], 1
    %s426 = scalar_lea.sflag [#allocation4], 1
    %427 = vsyncpa %s426, 1

</llo_original>
